<compile_context>
chip_gen: v7x
topology: tpu7x:2x2x1
jax: 0.10.0
libtpu: 0.0.40
codegen_flags: <defaults>
</compile_context>

<pallas_src>
import jax
import jax.numpy as jnp
from jax.experimental import pallas as pl
from jax.experimental.pallas import tpu as pltpu


def circle_fused_kernel(w_ref, b_ref, x_ref, o_ref):
    """w_ref: SMEM (2,) fused weight, b_ref: SMEM (1,) fused bias.
    x_ref:  VMEM (2, TN) tile of the transposed input.
    o_ref:  VMEM (1, TN) tile of the output."""
    x0 = x_ref[0:1, :]                      # (1, TN)
    x1 = x_ref[1:2, :]                      # (1, TN)
    y = x0 * w_ref[0] + x1 * w_ref[1] + b_ref[0]   # pure VPU: 2 mul + 2 add
    o_ref[...] = y.astype(o_ref.dtype)


def circle_model_forward(x, w1, b1, w2, b2, *, tn=65536):
    """x: (N, 2) f32.  w1: (2, 8), b1: (8,), w2: (8, 1), b2: (1,).

    Computes second_layer(first_layer(x)) == (x @ w1 + b1) @ w2 + b2,
    i.e. the same math as the PyTorch module with weights stored (in, out).
    """
    n, in_features = x.shape
    assert in_features == 2
    out_dtype = x.dtype

    # --- Exact algebraic fusion of the two linear layers (no activation). ---
    w_eff = (w1 @ w2).reshape(2).astype(jnp.float32)        # (2,)
    b_eff = (b1 @ w2 + b2).reshape(1).astype(jnp.float32)   # (1,)

    # --- Lane-dense layout: batch N on the lane (last) axis, padded to tile.
    n_pad = max(pl.cdiv(n, 128) * 128, 128)
    tile_n = min(tn, n_pad)
    tile_n = pl.cdiv(tile_n, 128) * 128
    n_pad = pl.cdiv(n_pad, tile_n) * tile_n

    x_t = jnp.pad(x.T.astype(jnp.float32), ((0, 0), (0, n_pad - n)))  # (2, n_pad)

    grid = (n_pad // tile_n,)

    out = pl.pallas_call(
        circle_fused_kernel,
        out_shape=jax.ShapeDtypeStruct((1, n_pad), jnp.float32),
        grid=grid,
        in_specs=[
            pl.BlockSpec(memory_space=pltpu.MemorySpace.SMEM),   # w_eff (2,)
            pl.BlockSpec(memory_space=pltpu.MemorySpace.SMEM),   # b_eff (1,)
            pl.BlockSpec((2, tile_n), lambda i: (0, i)),         # x tile
        ],
        out_specs=pl.BlockSpec((1, tile_n), lambda i: (0, i)),
        compiler_params=pltpu.CompilerParams(
            dimension_semantics=("parallel",),
        ),
    )(w_eff, b_eff, x_t)

    return out[0, :n].reshape(n, 1).astype(out_dtype)


def init_params(key):
    """Deterministic init matching nn.Linear shapes (2->8, 8->1), stored (in, out)."""
    k1, k2, k3, k4 = jax.random.split(key, 4)
    lim1 = 1.0 / jnp.sqrt(2.0)
    lim2 = 1.0 / jnp.sqrt(8.0)
    w1 = jax.random.uniform(k1, (2, 8), jnp.float32, -lim1, lim1)   # (in, out)
    b1 = jax.random.uniform(k2, (8,), jnp.float32, -lim1, lim1)
    w2 = jax.random.uniform(k3, (8, 1), jnp.float32, -lim2, lim2)   # (in, out)
    b2 = jax.random.uniform(k4, (1,), jnp.float32, -lim2, lim2)
    return w1, b1, w2, b2


def _reference(x, w1, b1, w2, b2):
    return (x @ w1 + b1[None, :]) @ w2 + b2[None, :]


if __name__ == "__main__":
    key = jax.random.PRNGKey(0)
    kx, kx2, kp = jax.random.split(key, 3)

    w1, b1, w2, b2 = init_params(kp)

    # Small batch (single padded tile).
    N1 = 8
    x1 = jax.random.normal(kx, (N1, 2), jnp.float32)
    out1 = jax.block_until_ready(circle_model_forward(x1, w1, b1, w2, b2))
    ref1 = _reference(x1, w1, b1, w2, b2)
    assert out1.shape == (N1, 1)
    assert jnp.allclose(out1, ref1, atol=1e-5, rtol=1e-5)

    # Batch that is not a multiple of the tile size (exercises padding + grid).
    N2 = 300
    x2 = jax.random.normal(kx2, (N2, 2), jnp.float32)
    out2 = jax.block_until_ready(
        circle_model_forward(x2, w1, b1, w2, b2, tn=128))
    ref2 = _reference(x2, w1, b1, w2, b2)
    assert out2.shape == (N2, 1)
    assert jnp.allclose(out2, ref2, atol=1e-5, rtol=1e-5)

    print("KERNEL_OK")
</pallas_src>

<mosaic_0001>
module attributes {stable_mosaic.version = 11 : i64} {
  func.func @circle_fused_kernel(%arg0: i32, %arg1: memref<2xf32, #tpu.memory_space<smem>>, %arg2: memref<1xf32, #tpu.memory_space<smem>>, %arg3: memref<2x128xf32, #tpu.memory_space<vmem>>, %arg4: memref<1x128xf32, #tpu.memory_space<vmem>>) attributes {dimension_semantics = [#tpu.dimension_semantics<parallel>], iteration_bounds = array<i64: 1>, scalar_prefetch = 0 : i64, scratch_operands = 0 : i64, tpu.core_type = #tpu.core_type<tc>, window_params = [{transform_indices = @transform_0, window_bounds = array<i64: 2>}, {transform_indices = @transform_1, window_bounds = array<i64: 1>}, {transform_indices = @transform_2, window_bounds = array<i64: 2, 128>}, {transform_indices = @transform_3, window_bounds = array<i64: 1, 128>}]} {
    %c0 = arith.constant 0 : index
    %c0_0 = arith.constant 0 : index
    %0 = vector.load %arg3[%c0, %c0_0] : memref<2x128xf32, #tpu.memory_space<vmem>>, vector<1x128xf32>
    %c1 = arith.constant 1 : index
    %c0_1 = arith.constant 0 : index
    %1 = vector.load %arg3[%c1, %c0_1] : memref<2x128xf32, #tpu.memory_space<vmem>>, vector<1x128xf32>
    %c0_2 = arith.constant 0 : index
    %2 = memref.load %arg1[%c0_2] : memref<2xf32, #tpu.memory_space<smem>>
    %3 = vector.broadcast %2 : f32 to vector<1x128xf32>
    %4 = arith.mulf %0, %3 : vector<1x128xf32>
    %c1_3 = arith.constant 1 : index
    %5 = memref.load %arg1[%c1_3] : memref<2xf32, #tpu.memory_space<smem>>
    %6 = vector.broadcast %5 : f32 to vector<1x128xf32>
    %7 = arith.mulf %1, %6 : vector<1x128xf32>
    %8 = arith.addf %4, %7 : vector<1x128xf32>
    %c0_4 = arith.constant 0 : index
    %9 = memref.load %arg2[%c0_4] : memref<1xf32, #tpu.memory_space<smem>>
    %10 = vector.broadcast %9 : f32 to vector<1x128xf32>
    %11 = arith.addf %8, %10 : vector<1x128xf32>
    %c0_5 = arith.constant 0 : index
    %c0_6 = arith.constant 0 : index
    %12 = vector.load %arg4[%c0_5, %c0_6] : memref<1x128xf32, #tpu.memory_space<vmem>>, vector<1x128xf32>
    tpu.vector_store %arg4[%c0_5, %c0_6], %11 {strides = array<i32>} : memref<1x128xf32, #tpu.memory_space<vmem>>, vector<1x128xf32>,
    return
  }
  func.func @transform_0(%arg0: i32) -> i32 {
    %c0_i32 = arith.constant 0 : i32
    %c0_i32_0 = arith.constant 0 : i32
    return %c0_i32 : i32
  }
  func.func @transform_1(%arg0: i32) -> i32 {
    %c0_i32 = arith.constant 0 : i32
    %c0_i32_0 = arith.constant 0 : i32
    return %c0_i32 : i32
  }
  func.func @transform_2(%arg0: i32) -> (i32, i32) {
    %c0_i32 = arith.constant 0 : i32
    %c0_i32_0 = arith.constant 0 : i32
    return %c0_i32, %arg0 : i32, i32
  }
  func.func @transform_3(%arg0: i32) -> (i32, i32) {
    %c0_i32 = arith.constant 0 : i32
    %c0_i32_0 = arith.constant 0 : i32
    return %c0_i32, %arg0 : i32, i32
  }
}

</mosaic_0001>

<llo_original>
// kernel: tpu_custom_call.1
$region0: #{tpu_custom_call.1}
  #allocation0 [shape = 'u32[]', space=smem, size = 0x4, offset = 0x4, fixed_abs, tag = 'smem constant byte address 0x4 - core index']
  #allocation1 [shape = 'u32[144,128]{1,0:T(1,128)}', space=vmem, size = 0x12000, scoped, tag = 'internal scratch']
  #allocation2 [shape = 'f32[1]{0:T(128)S(6)}', space=smem, size = 0x200, scoped, tag = 'scoped memory for tpu_custom_call.1']
  %s0 = inlined_call_operand.vmem [shape: f32[2], index: 0, kind: input, shape index: {}]
  %s1 = inlined_call_operand.<no memory space> [shape: f32[1], index: 1, kind: input, shape index: {}]
  %s2 = inlined_call_operand.vmem [shape: f32[2,128], index: 2, kind: input, shape index: {}]
  %s3 = inlined_call_operand.hbm [shape: f32[1,128], index: 3, kind: output, shape index: {}]
  %s4 = sld [smem:[#allocation0]]
  $region26: #{tpu_custom_call.1} parent=0
    _
  %s6 = ssub.s32 1, %s4
  %s7 = scalar_select 0, %s6, %s4
  %8 = sst [smem:[#allocation2]] %s1
  $region1: #{tpu_custom_call.1} parent=0
    #allocation3 [shape = 'u8[512]{0}', space=smem, size = 0x200, scoped, tag = 'input window, operand 0, single buffered']
    #allocation4 [shape = 's32[1]{0}', space=sflag, size = 0x4, scoped, tag = 'scoped memory for tpu_custom_call.1']
    #allocation5 [shape = 's32[1]{0}', space=sflag, size = 0x4, scoped, tag = 'scoped memory for tpu_custom_call.1']
    #allocation6 [shape = 'u8[512]{0}', space=vmem, size = 0x400, scoped, tag = 'output window, operand 0, single buffered']
    %9 = vsyncpa [#allocation5], 0
    %10 = vsyncpa [#allocation4], 0
    // Predicated region
    $region2: #{tpu_custom_call.1} parent=1 // pred_check
      _
    $region3: #{tpu_custom_call.1} parent=1 // pred_check_branch
      %12 = sbr.rel (0) target = $region5
    $region4: #{tpu_custom_call.1} parent=1 // pred_region
      %s14 = ssub.s32 16, 16
      %15 = vsyncadd [#allocation5], %s14
      %s17 = sshll.u32 %s0, 4
      %s18 = int_to_ptr.vmem [resolvable:$true] %s17
      %20 = dma.vmem_to_smem %s18, 16, [#allocation3], [#allocation5]
    $region5: #{tpu_custom_call.1} parent=1 // pred_fallthru
      _
    // Predicated region
    $region6: #{tpu_custom_call.1} parent=1 // pred_check
      _
    $region7: #{tpu_custom_call.1} parent=1 // pred_check_branch
      %22 = sbr.rel (0) target = $region9
    $region8: #{tpu_custom_call.1} parent=1 // pred_region
      _
    $region9: #{tpu_custom_call.1} parent=1 // pred_fallthru
      _
    // Predicated region
    $region10: #{tpu_custom_call.1} parent=1 // pred_check
      _
    $region11: #{tpu_custom_call.1} parent=1 // pred_check_branch
      %24 = sbr.rel (0) target = $region13
    $region12: #{tpu_custom_call.1} parent=1 // pred_region
      _
    $region13: #{tpu_custom_call.1} parent=1 // pred_fallthru
      _
    // Predicated region
    $region14: #{tpu_custom_call.1} parent=1 // pred_check
      _
    $region15: #{tpu_custom_call.1} parent=1 // pred_check_branch
      %26 = sbr.rel (0) target = $region17
    $region16: #{tpu_custom_call.1} parent=1 // pred_region
      %27 = dma.done [#allocation5], 16
    $region17: #{tpu_custom_call.1} parent=1 // pred_fallthru
      _
    %28 = sfence
    %v29 = vld [vmem:[%s2] sm:$0x1]
    %v30 = vld [vmem:[%s2 + $0x1] sm:$0x1]
    %s31 = sld [smem:[#allocation3]]
    %v32 = vstv %s31
    %v33 = vmul.f32 %v29, %v32
    %s34 = sld [smem:[#allocation3 + $0x1]]
    %v35 = vstv %s34
    %v36 = vmul.f32 %v30, %v35
    %v37 = vadd.f32 %v33, %v36
    %s38 = sld [smem:[#allocation2]]
    %v39 = vstv %s38
    %v40 = vadd.f32 %v37, %v39
    %41 = vst [vmem:[#allocation6] sm:$0x1] %v40
    // Predicated region
    $region18: #{tpu_custom_call.1} parent=1 // pred_check
      _
    $region19: #{tpu_custom_call.1} parent=1 // pred_check_branch
      %43 = sbr.rel (0) target = $region21
    $region20: #{tpu_custom_call.1} parent=1 // pred_region
      %s45 = ssub.s32 16, 16
      %46 = vsyncadd [#allocation4], %s45
      %s48 = sshll.u32 [#allocation6], 4
      %s49 = int_to_ptr.vmem [resolvable:$true] %s48
      %51 = dma.vmem_to_hbm [thread:$0]  %s49, 16, %s3, [#allocation4]
    $region21: #{tpu_custom_call.1} parent=1 // pred_fallthru
      _
    // Predicated region
    $region22: #{tpu_custom_call.1} parent=1 // pred_check
      _
    $region23: #{tpu_custom_call.1} parent=1 // pred_check_branch
      %53 = sbr.rel (0) target = $region25
    $region24: #{tpu_custom_call.1} parent=1 // pred_region
      %54 = dma.done [#allocation4], 16
    $region25: #{tpu_custom_call.1} parent=1 // pred_fallthru
      _
    %55 = vsyncpa [#allocation4], 1
    %56 = vsyncpa [#allocation5], 1

</llo_original>
